<compile_context>
chip_gen: v6e
topology: v6e:2x2x1
jax: 0.10.0
libtpu: 0.0.40
codegen_flags: <defaults>
</compile_context>

<pallas_src>
import functools

import jax
import jax.numpy as jnp
from jax import lax
from jax.experimental import pallas as pl
from jax.experimental.pallas import tpu as pltpu


def _round_up(x, m):
    return ((x + m - 1) // m) * m


# ----------------------------------------------------------------------------
# Kernel: all n_layers GRU steps for one batch tile, hidden carried in vregs.
# ----------------------------------------------------------------------------
def encoder_gru_kernel(x0_ref, h0_ref, w_ref, b_ref, out_ref, *, n_layers):
    Hp = h0_ref.shape[-1]
    w = w_ref[...]                          # (2Hp, 4Hp) bf16, resident
    b = b_ref[...]                          # (1, 4Hp)  f32, resident

    def gru_step(x_bf16, h_f32):
        # bf16 concat halves the (bb, 2Hp) intermediate; one fused MXU matmul.
        xh = jnp.concatenate([x_bf16, h_f32.astype(jnp.bfloat16)], axis=-1)
        g = jnp.dot(xh, w, preferred_element_type=jnp.float32) + b
        # Gate columns are Hp-wide (128-aligned) -> whole-vreg slices.
        r = jax.nn.sigmoid(g[:, 0:Hp])
        z = jax.nn.sigmoid(g[:, Hp:2 * Hp])
        n = jnp.tanh(g[:, 2 * Hp:3 * Hp] + r * g[:, 3 * Hp:4 * Hp])
        return n + z * (h_f32 - n)          # new hidden, f32

    # Layer 0 peeled: input is the embedded token block (already bf16).
    h = gru_step(x0_ref[...], h0_ref[...])

    # Layers 1..n-1: input == previous hidden.  n_layers is static Python.
    if n_layers > 1:
        h = lax.fori_loop(
            1, n_layers,
            lambda _, hh: gru_step(hh.astype(jnp.bfloat16), hh),
            h, unroll=True)

    out_ref[...] = h                        # lane-dense (block_b, Hp) store


# ----------------------------------------------------------------------------
# One-time parameter packing (wrapper-side glue).
# ----------------------------------------------------------------------------
def prepare_encoder_params(params):
    """Pre-transpose + fuse GRU weights; pre-pad embedding table to (V, Hp)."""
    emb = params["embedding"]
    H = emb.shape[1]
    Hp = _round_up(H, 128)
    w_ih, w_hh = params["w_ih"], params["w_hh"]
    b_ih, b_hh = params["b_ih"], params["b_hh"]

    def padT(w):  # (out=H, in=H) -> transposed, zero-padded to (Hp, Hp)
        return jnp.zeros((Hp, Hp), jnp.float32).at[:H, :H].set(w.T)

    def padb(b):
        return jnp.zeros((Hp,), jnp.float32).at[:H].set(b)

    wir, wiz, win = w_ih[:H], w_ih[H:2 * H], w_ih[2 * H:]
    whr, whz, whn = w_hh[:H], w_hh[H:2 * H], w_hh[2 * H:]
    zeros = jnp.zeros((Hp, Hp), jnp.float32)
    top = jnp.concatenate([padT(wir), padT(wiz), padT(win), zeros], axis=1)
    bot = jnp.concatenate([padT(whr), padT(whz), zeros, padT(whn)], axis=1)
    w_cat = jnp.concatenate([top, bot], axis=0).astype(jnp.bfloat16)  # (2Hp,4Hp)

    b_cat = jnp.concatenate([
        padb(b_ih[:H] + b_hh[:H]),            # r: biases pre-summed
        padb(b_ih[H:2 * H] + b_hh[H:2 * H]),  # z: biases pre-summed
        padb(b_ih[2 * H:]),                   # i_n bias
        padb(b_hh[2 * H:]),                   # h_n bias (stays inside r*(...))
    ]).reshape(1, 4 * Hp)

    # Embedding table padded to Hp lanes, stored bf16 (matmul casts anyway).
    emb_p = jnp.zeros((emb.shape[0], Hp), jnp.float32).at[:, :H].set(emb)
    emb_p = emb_p.astype(jnp.bfloat16)

    return {"embedding": emb, "embedding_padded": emb_p,
            "w_cat": w_cat, "b_cat": b_cat, "H": H, "Hp": Hp}


# ----------------------------------------------------------------------------
# Batch tiling + per-call input prep (embedding gather is plain-JAX glue).
# ----------------------------------------------------------------------------
def _choose_block_b(B):
    Bp8 = _round_up(max(B, 8), 8)
    if Bp8 <= 128:
        block_b = Bp8                                   # single tile
    elif Bp8 <= 512:
        block_b = _round_up((Bp8 + 1) // 2, 8)          # >=2 tiles for v7x 2 TCs
    else:
        block_b = 256                                   # amortize grid overhead
    Bp = _round_up(Bp8, block_b)
    return Bp, block_b


def _prepare_inputs(input_ids, hidden, prepared):
    H, Hp = prepared["H"], prepared["Hp"]
    B = input_ids.shape[0]
    Bp, block_b = _choose_block_b(B)
    ids = jnp.pad(input_ids, (0, Bp - B))               # pad rows gather token 0;
    x0p = jnp.take(prepared["embedding_padded"], ids, axis=0)  # (Bp,Hp) bf16
    h0p = jnp.pad(hidden.reshape(B, H).astype(jnp.float32),
                  ((0, Bp - B), (0, Hp - H)))           # (Bp,Hp) f32
    return x0p, h0p, Bp, block_b


def _resident_spec(shape):
    """Constant-index (resident) block; single-buffered when supported."""
    idx = lambda i: (0,) * len(shape)
    try:
        return pl.BlockSpec(shape, idx, pipeline_mode=pl.Buffered(1))
    except (AttributeError, TypeError):
        return pl.BlockSpec(shape, idx)


# ----------------------------------------------------------------------------
# Forward wrapper.
# ----------------------------------------------------------------------------
def encoder_rnn_forward(input_ids, hidden, prepared, n_layers=1):
    """input_ids: (B,) int32 token ids; hidden: (1, B, H) float32.
    Returns (output (1, B, H), hidden_out (1, B, H)) like the PyTorch module."""
    H, Hp = prepared["H"], prepared["Hp"]
    B = input_ids.shape[0]
    w_cat, b_cat = prepared["w_cat"], prepared["b_cat"]
    x0p, h0p, Bp, block_b = _prepare_inputs(input_ids, hidden, prepared)

    # Explicit VMEM budget: weights single-buffered, activation blocks x2.
    vmem_need = (int(w_cat.size) * 2 + int(b_cat.size) * 4
                 + 2 * block_b * Hp * (2 + 4 + 4))      # x0 bf16, h0 f32, out f32
    vmem_limit = int(min(max(4 * vmem_need, 32 * 2**20), 48 * 2**20))

    kernel = functools.partial(encoder_gru_kernel, n_layers=n_layers)

    out = pl.pallas_call(
        kernel,
        out_shape=jax.ShapeDtypeStruct((Bp, Hp), jnp.float32),
        grid_spec=pltpu.PrefetchScalarGridSpec(
            num_scalar_prefetch=0,
            grid=(Bp // block_b,),
            in_specs=[
                pl.BlockSpec((block_b, Hp), lambda i: (i, 0)),   # embedded x (bf16)
                pl.BlockSpec((block_b, Hp), lambda i: (i, 0)),   # initial h (f32)
                _resident_spec((2 * Hp, 4 * Hp)),                # fused W, resident
                _resident_spec((1, 4 * Hp)),                     # fused bias, resident
            ],
            out_specs=pl.BlockSpec((block_b, Hp), lambda i: (i, 0)),
        ),
        compiler_params=pltpu.CompilerParams(
            dimension_semantics=("parallel",),
            vmem_limit_bytes=vmem_limit),
    )(x0p, h0p, w_cat, b_cat)

    hy = out[:B, :H]
    output = hy.reshape(1, B, H)
    hidden_out = hy.reshape(1, B, H)
    return output, hidden_out


# ----------------------------------------------------------------------------
# Parameter init mirroring the PyTorch module.
# ----------------------------------------------------------------------------
def init_params(key, input_size, hidden_size):
    ks = jax.random.split(key, 5)
    scale = 1.0 / jnp.sqrt(jnp.float32(hidden_size))
    return {
        "embedding": jax.random.normal(ks[0], (input_size, hidden_size), jnp.float32),
        "w_ih": jax.random.uniform(ks[1], (3 * hidden_size, hidden_size),
                                   jnp.float32, -scale, scale),
        "w_hh": jax.random.uniform(ks[2], (3 * hidden_size, hidden_size),
                                   jnp.float32, -scale, scale),
        "b_ih": jax.random.uniform(ks[3], (3 * hidden_size,), jnp.float32, -scale, scale),
        "b_hh": jax.random.uniform(ks[4], (3 * hidden_size,), jnp.float32, -scale, scale),
    }


# ----------------------------------------------------------------------------
# References.
# ----------------------------------------------------------------------------
def _reference_f32(input_ids, hidden, p, n_layers=1):
    """Pure-JAX f32 mirror of the PyTorch EncoderRNN forward."""
    H = p["embedding"].shape[1]
    B = input_ids.shape[0]
    out = jnp.take(p["embedding"], input_ids, axis=0)
    h = hidden.reshape(B, H)
    for _ in range(n_layers):
        gi = out @ p["w_ih"].T + p["b_ih"]
        gh = h @ p["w_hh"].T + p["b_hh"]
        i_r, i_z, i_n = jnp.split(gi, 3, axis=1)
        h_r, h_z, h_n = jnp.split(gh, 3, axis=1)
        r = jax.nn.sigmoid(i_r + h_r)
        z = jax.nn.sigmoid(i_z + h_z)
        n = jnp.tanh(i_n + r * h_n)
        h = n + z * (h - n)
        out = h
    return out.reshape(1, B, H), h.reshape(1, B, H)


def _reference_packed(input_ids, hidden, prepared, n_layers=1):
    """Pure-JAX mirror of the kernel math (bf16 matmul inputs, f32 gates)."""
    H, Hp = prepared["H"], prepared["Hp"]
    B = input_ids.shape[0]
    x0, h, _, _ = _prepare_inputs(input_ids, hidden, prepared)
    w, b = prepared["w_cat"], prepared["b_cat"]
    for layer in range(n_layers):
        x_bf16 = x0 if layer == 0 else h.astype(jnp.bfloat16)
        xh = jnp.concatenate([x_bf16, h.astype(jnp.bfloat16)], axis=-1)
        g = jnp.dot(xh, w, preferred_element_type=jnp.float32) + b
        r = jax.nn.sigmoid(g[:, :Hp])
        z = jax.nn.sigmoid(g[:, Hp:2 * Hp])
        n = jnp.tanh(g[:, 2 * Hp:3 * Hp] + r * g[:, 3 * Hp:4 * Hp])
        h = n + z * (h - n)
    return h[:B, :H]


if __name__ == "__main__":
    # Small shapes consistent with the module (batch, hidden_size, vocab).
    B, H, V = 8, 32, 48

    key = jax.random.PRNGKey(0)
    kp, ki, kh = jax.random.split(key, 3)
    params = init_params(kp, V, H)
    prepared = prepare_encoder_params(params)   # one-time weight fuse/transpose

    input_ids = jax.random.randint(ki, (B,), 0, V, dtype=jnp.int32)
    hidden = jax.random.normal(kh, (1, B, H), jnp.float32)

    for n_layers in (1, 3):   # default module config, plus exercise the layer loop
        output, hidden_out = encoder_rnn_forward(input_ids, hidden, prepared,
                                                 n_layers=n_layers)
        jax.block_until_ready((output, hidden_out))

        assert output.shape == (1, B, H) and hidden_out.shape == (1, B, H)

        # Semantic check vs. f32 PyTorch-equivalent math (loose: bf16 matmuls).
        ref_o, ref_h = _reference_f32(input_ids, hidden, params, n_layers=n_layers)
        assert jnp.allclose(output, ref_o, atol=7.5e-2), f"output mismatch (L={n_layers})"
        assert jnp.allclose(hidden_out, ref_h, atol=7.5e-2), f"hidden mismatch (L={n_layers})"

        # Tight check vs. a pure-JAX mirror of the kernel's bf16/f32 math.
        mirror = _reference_packed(input_ids, hidden, prepared, n_layers=n_layers)
        assert jnp.allclose(output.reshape(B, H), mirror, atol=2e-3), \
            f"kernel/mirror mismatch (L={n_layers})"

    print("KERNEL_OK")
</pallas_src>

<mosaic_0001>
module attributes {stable_mosaic.version = 11 : i64} {
  func.func @encoder_gru_kernel(%arg0: i32, %arg1: memref<8x128xbf16, #tpu.memory_space<vmem>>, %arg2: memref<8x128xf32, #tpu.memory_space<vmem>>, %arg3: memref<256x512xbf16, #tpu.memory_space<vmem>>, %arg4: memref<1x512xf32, #tpu.memory_space<vmem>>, %arg5: memref<8x128xf32, #tpu.memory_space<vmem>>) attributes {dimension_semantics = [#tpu.dimension_semantics<parallel>], iteration_bounds = array<i64: 1>, scalar_prefetch = 0 : i64, scratch_operands = 0 : i64, tpu.core_type = #tpu.core_type<tc>, window_params = [{transform_indices = @transform_0, window_bounds = array<i64: 8, 128>}, {transform_indices = @transform_1, window_bounds = array<i64: 8, 128>}, {pipeline_mode = #tpu.pipeline_mode<synchronous>, transform_indices = @transform_2, window_bounds = array<i64: 256, 512>}, {pipeline_mode = #tpu.pipeline_mode<synchronous>, transform_indices = @transform_3, window_bounds = array<i64: 1, 512>}, {transform_indices = @transform_4, window_bounds = array<i64: 8, 128>}]} {
    %c0 = arith.constant 0 : index
    %c0_0 = arith.constant 0 : index
    %0 = vector.load %arg3[%c0, %c0_0] : memref<256x512xbf16, #tpu.memory_space<vmem>>, vector<256x512xbf16>
    %c0_1 = arith.constant 0 : index
    %c0_2 = arith.constant 0 : index
    %1 = vector.load %arg4[%c0_1, %c0_2] : memref<1x512xf32, #tpu.memory_space<vmem>>, vector<1x512xf32>
    %c0_3 = arith.constant 0 : index
    %c0_4 = arith.constant 0 : index
    %2 = vector.load %arg1[%c0_3, %c0_4] : memref<8x128xbf16, #tpu.memory_space<vmem>>, vector<8x128xbf16>
    %c0_5 = arith.constant 0 : index
    %c0_6 = arith.constant 0 : index
    %3 = vector.load %arg2[%c0_5, %c0_6] : memref<8x128xf32, #tpu.memory_space<vmem>>, vector<8x128xf32>
    %4 = arith.truncf %3 : vector<8x128xf32> to vector<8x128xbf16>
    %5 = tpu.concatenate %2, %4 in 1 : vector<8x128xbf16>, vector<8x128xbf16> -> vector<8x256xbf16>
    %cst = arith.constant dense<0.000000e+00> : vector<8x512xf32>
    %6 = tpu.matmul %5, %0, %cst {dimension_numbers = #tpu.dot_dimension_numbers<[1], [0], [0], [1], [0, 0, 1, 1], [], []>} : vector<8x256xbf16>, vector<256x512xbf16>, vector<8x512xf32> -> vector<8x512xf32>
    %7 = vector.broadcast %1 : vector<1x512xf32> to vector<8x512xf32>
    %8 = arith.addf %6, %7 : vector<8x512xf32>
    %9 = vector.extract_strided_slice %8 {offsets = [0, 0], sizes = [8, 128], strides = [1, 1]} : vector<8x512xf32> to vector<8x128xf32>
    %10 = arith.negf %9 : vector<8x128xf32>
    %11 = math.exp %10 : vector<8x128xf32>
    %cst_7 = arith.constant 1.000000e+00 : f32
    %12 = vector.broadcast %cst_7 : f32 to vector<8x128xf32>
    %13 = arith.addf %12, %11 : vector<8x128xf32>
    %14 = arith.divf %12, %13 : vector<8x128xf32>
    %15 = vector.extract_strided_slice %8 {offsets = [0, 128], sizes = [8, 128], strides = [1, 1]} : vector<8x512xf32> to vector<8x128xf32>
    %16 = arith.negf %15 : vector<8x128xf32>
    %17 = math.exp %16 : vector<8x128xf32>
    %cst_8 = arith.constant 1.000000e+00 : f32
    %18 = vector.broadcast %cst_8 : f32 to vector<8x128xf32>
    %19 = arith.addf %18, %17 : vector<8x128xf32>
    %20 = arith.divf %18, %19 : vector<8x128xf32>
    %21 = vector.extract_strided_slice %8 {offsets = [0, 256], sizes = [8, 128], strides = [1, 1]} : vector<8x512xf32> to vector<8x128xf32>
    %22 = vector.extract_strided_slice %8 {offsets = [0, 384], sizes = [8, 128], strides = [1, 1]} : vector<8x512xf32> to vector<8x128xf32>
    %23 = arith.mulf %14, %22 : vector<8x128xf32>
    %24 = arith.addf %21, %23 : vector<8x128xf32>
    %25 = math.tanh %24 : vector<8x128xf32>
    %26 = arith.subf %3, %25 : vector<8x128xf32>
    %27 = arith.mulf %20, %26 : vector<8x128xf32>
    %28 = arith.addf %25, %27 : vector<8x128xf32>
    %c0_9 = arith.constant 0 : index
    %c0_10 = arith.constant 0 : index
    %29 = vector.load %arg5[%c0_9, %c0_10] : memref<8x128xf32, #tpu.memory_space<vmem>>, vector<8x128xf32>
    tpu.vector_store %arg5[%c0_9, %c0_10], %28 {strides = array<i32>} : memref<8x128xf32, #tpu.memory_space<vmem>>, vector<8x128xf32>,
    return
  }
  func.func @transform_0(%arg0: i32) -> (i32, i32) {
    %c0_i32 = arith.constant 0 : i32
    %c0_i32_0 = arith.constant 0 : i32
    return %arg0, %c0_i32 : i32, i32
  }
  func.func @transform_1(%arg0: i32) -> (i32, i32) {
    %c0_i32 = arith.constant 0 : i32
    %c0_i32_0 = arith.constant 0 : i32
    return %arg0, %c0_i32 : i32, i32
  }
  func.func @transform_2(%arg0: i32) -> (i32, i32) {
    %c0_i32 = arith.constant 0 : i32
    %c0_i32_0 = arith.constant 0 : i32
    %c0_i32_1 = arith.constant 0 : i32
    return %c0_i32, %c0_i32_0 : i32, i32
  }
  func.func @transform_3(%arg0: i32) -> (i32, i32) {
    %c0_i32 = arith.constant 0 : i32
    %c0_i32_0 = arith.constant 0 : i32
    %c0_i32_1 = arith.constant 0 : i32
    return %c0_i32, %c0_i32_0 : i32, i32
  }
  func.func @transform_4(%arg0: i32) -> (i32, i32) {
    %c0_i32 = arith.constant 0 : i32
    %c0_i32_0 = arith.constant 0 : i32
    return %arg0, %c0_i32 : i32, i32
  }
}

</mosaic_0001>

<llo_original>
// kernel: tpu_custom_call.1
$region0: #{tpu_custom_call.1}
  #allocation0 [shape = 'u32[]', space=smem, size = 0x4, offset = 0x4, fixed_abs, tag = 'smem constant byte address 0x4 - core index']
  #allocation1 [shape = 'u32[144,128]{1,0:T(1,128)}', space=vmem, size = 0x12000, scoped, tag = 'internal scratch']
  %s0 = inlined_call_operand.hbm [shape: bf16[8,128], index: 0, kind: input, shape index: {}]
  %s1 = inlined_call_operand.hbm [shape: f32[8,128], index: 1, kind: input, shape index: {}]
  %s2 = inlined_call_operand.hbm [shape: bf16[256,512], index: 2, kind: input, shape index: {}]
  %s3 = inlined_call_operand.vmem [shape: f32[1,512], index: 3, kind: input, shape index: {}]
  %s4 = inlined_call_operand.hbm [shape: f32[8,128], index: 4, kind: output, shape index: {}]
  %s5 = sld [smem:[#allocation0]]
  $region38: #{tpu_custom_call.1} parent=0
    _
  %s7 = ssub.s32 1, %s5
  %s8 = scalar_select 0, %s7, %s5
  $region1: #{tpu_custom_call.1} parent=0
    #allocation2 [shape = 'u8[2048]{0}', space=vmem, size = 0x800, scoped, tag = 'input window, operand 0, single buffered']
    #allocation3 [shape = 's32[1]{0}', space=sflag, size = 0x4, scoped, tag = 'scoped memory for tpu_custom_call.1']
    #allocation4 [shape = 's32[1]{0}', space=sflag, size = 0x4, scoped, tag = 'scoped memory for tpu_custom_call.1']
    #allocation5 [shape = 'u8[4096]{0}', space=vmem, size = 0x1000, scoped, tag = 'input window, operand 1, single buffered']
    #allocation6 [shape = 's32[1]{0}', space=sflag, size = 0x4, scoped, tag = 'scoped memory for tpu_custom_call.1']
    #allocation7 [shape = 'u8[262144]{0}', space=vmem, size = 0x40000, scoped, tag = 'input window, operand 2, single buffered']
    #allocation8 [shape = 'u8[4096]{0}', space=vmem, size = 0x1000, scoped, tag = 'output window, operand 0, single buffered']
    %9 = vsyncpa [#allocation3], 0
    %10 = vsyncpa [#allocation6], 0
    %11 = vsyncpa [#allocation4], 0
    // Predicated region
    $region2: #{tpu_custom_call.1} parent=1 // pred_check
      _
    $region3: #{tpu_custom_call.1} parent=1 // pred_check_branch
      %13 = sbr.rel (0) target = $region5
    $region4: #{tpu_custom_call.1} parent=1 // pred_region
      %s15 = ssub.s32 64, 64
      %16 = vsyncadd [#allocation3], %s15
      %s18 = sshll.u32 [#allocation2], 4
      %s19 = int_to_ptr.vmem [resolvable:$true] %s18
      %21 = dma.hbm_to_vmem [thread:$0]  %s0, 64, %s19, [#allocation3]
    $region5: #{tpu_custom_call.1} parent=1 // pred_fallthru
      _
    // Predicated region
    $region6: #{tpu_custom_call.1} parent=1 // pred_check
      _
    $region7: #{tpu_custom_call.1} parent=1 // pred_check_branch
      %23 = sbr.rel (0) target = $region9
    $region8: #{tpu_custom_call.1} parent=1 // pred_region
      %s25 = ssub.s32 128, 128
      %26 = vsyncadd [#allocation6], %s25
      %s28 = sshll.u32 [#allocation5], 4
      %s29 = int_to_ptr.vmem [resolvable:$true] %s28
      %31 = dma.hbm_to_vmem [thread:$0]  %s1, 128, %s29, [#allocation6]
    $region9: #{tpu_custom_call.1} parent=1 // pred_fallthru
      _
    // Predicated region
    $region10: #{tpu_custom_call.1} parent=1 // pred_check
      _
    $region11: #{tpu_custom_call.1} parent=1 // pred_check_branch
      %33 = sbr.rel (0) target = $region13
    $region12: #{tpu_custom_call.1} parent=1 // pred_region
      %s35 = ssub.s32 8192, 8192
      %36 = vsyncadd [#allocation6], %s35
      %s37 = sshll.u32 [#allocation7], 4
      %s38 = int_to_ptr.vmem [resolvable:$true] %s37
      %43 = dma.hbm_to_vmem [thread:$0]  %s2, 8192, %s38, [#allocation6], 256, 256, 16
    $region13: #{tpu_custom_call.1} parent=1 // pred_fallthru
      _
    // Predicated region
    $region14: #{tpu_custom_call.1} parent=1 // pred_check
      _
    $region15: #{tpu_custom_call.1} parent=1 // pred_check_branch
      %45 = sbr.rel (0) target = $region17
    $region16: #{tpu_custom_call.1} parent=1 // pred_region
      _
    $region17: #{tpu_custom_call.1} parent=1 // pred_fallthru
      _
    // Predicated region
    $region18: #{tpu_custom_call.1} parent=1 // pred_check
      _
    $region19: #{tpu_custom_call.1} parent=1 // pred_check_branch
      %47 = sbr.rel (0) target = $region21
    $region20: #{tpu_custom_call.1} parent=1 // pred_region
      %48 = dma.done [#allocation3], 64
    $region21: #{tpu_custom_call.1} parent=1 // pred_fallthru
      _
    // Predicated region
    $region22: #{tpu_custom_call.1} parent=1 // pred_check
      _
    $region23: #{tpu_custom_call.1} parent=1 // pred_check_branch
      %50 = sbr.rel (0) target = $region25
    $region24: #{tpu_custom_call.1} parent=1 // pred_region
      %51 = dma.done [#allocation6], 128
    $region25: #{tpu_custom_call.1} parent=1 // pred_fallthru
      _
    // Predicated region
    $region26: #{tpu_custom_call.1} parent=1 // pred_check
      _
    $region27: #{tpu_custom_call.1} parent=1 // pred_check_branch
      %53 = sbr.rel (0) target = $region29
    $region28: #{tpu_custom_call.1} parent=1 // pred_region
      %54 = dma.done [#allocation6], 8192
    $region29: #{tpu_custom_call.1} parent=1 // pred_fallthru
      _
    %v55 = vld [vmem:[#allocation7] sm:$0xff]
    %v56 = vld [vmem:[#allocation7 + $0x8] sm:$0xff]
    %v57 = vld [vmem:[#allocation7 + $0x10] sm:$0xff]
    %v58 = vld [vmem:[#allocation7 + $0x18] sm:$0xff]
    %v59 = vld [vmem:[#allocation7 + $0x20] sm:$0xff]
    %v60 = vld [vmem:[#allocation7 + $0x28] sm:$0xff]
    %v61 = vld [vmem:[#allocation7 + $0x30] sm:$0xff]
    %v62 = vld [vmem:[#allocation7 + $0x38] sm:$0xff]
    %v63 = vld [vmem:[#allocation7 + $0x40] sm:$0xff]
    %v64 = vld [vmem:[#allocation7 + $0x48] sm:$0xff]
    %v65 = vld [vmem:[#allocation7 + $0x50] sm:$0xff]
    %v66 = vld [vmem:[#allocation7 + $0x58] sm:$0xff]
    %v67 = vld [vmem:[#allocation7 + $0x60] sm:$0xff]
    %v68 = vld [vmem:[#allocation7 + $0x68] sm:$0xff]
    %v69 = vld [vmem:[#allocation7 + $0x70] sm:$0xff]
    %v70 = vld [vmem:[#allocation7 + $0x78] sm:$0xff]
    %v71 = vld [vmem:[#allocation7 + $0x80] sm:$0xff]
    %v72 = vld [vmem:[#allocation7 + $0x88] sm:$0xff]
    %v73 = vld [vmem:[#allocation7 + $0x90] sm:$0xff]
    %v74 = vld [vmem:[#allocation7 + $0x98] sm:$0xff]
    %v75 = vld [vmem:[#allocation7 + $0xa0] sm:$0xff]
    %v76 = vld [vmem:[#allocation7 + $0xa8] sm:$0xff]
    %v77 = vld [vmem:[#allocation7 + $0xb0] sm:$0xff]
    %v78 = vld [vmem:[#allocation7 + $0xb8] sm:$0xff]
    %v79 = vld [vmem:[#allocation7 + $0xc0] sm:$0xff]
    %v80 = vld [vmem:[#allocation7 + $0xc8] sm:$0xff]
    %v81 = vld [vmem:[#allocation7 + $0xd0] sm:$0xff]
    %v82 = vld [vmem:[#allocation7 + $0xd8] sm:$0xff]
    %v83 = vld [vmem:[#allocation7 + $0xe0] sm:$0xff]
    %v84 = vld [vmem:[#allocation7 + $0xe8] sm:$0xff]
    %v85 = vld [vmem:[#allocation7 + $0xf0] sm:$0xff]
    %v86 = vld [vmem:[#allocation7 + $0xf8] sm:$0xff]
    %v87 = vld [vmem:[#allocation7 + $0x100] sm:$0xff]
    %v88 = vld [vmem:[#allocation7 + $0x108] sm:$0xff]
    %v89 = vld [vmem:[#allocation7 + $0x110] sm:$0xff]
    %v90 = vld [vmem:[#allocation7 + $0x118] sm:$0xff]
    %v91 = vld [vmem:[#allocation7 + $0x120] sm:$0xff]
    %v92 = vld [vmem:[#allocation7 + $0x128] sm:$0xff]
    %v93 = vld [vmem:[#allocation7 + $0x130] sm:$0xff]
    %v94 = vld [vmem:[#allocation7 + $0x138] sm:$0xff]
    %v95 = vld [vmem:[#allocation7 + $0x140] sm:$0xff]
    %v96 = vld [vmem:[#allocation7 + $0x148] sm:$0xff]
    %v97 = vld [vmem:[#allocation7 + $0x150] sm:$0xff]
    %v98 = vld [vmem:[#allocation7 + $0x158] sm:$0xff]
    %v99 = vld [vmem:[#allocation7 + $0x160] sm:$0xff]
    %v100 = vld [vmem:[#allocation7 + $0x168] sm:$0xff]
    %v101 = vld [vmem:[#allocation7 + $0x170] sm:$0xff]
    %v102 = vld [vmem:[#allocation7 + $0x178] sm:$0xff]
    %v103 = vld [vmem:[#allocation7 + $0x180] sm:$0xff]
    %v104 = vld [vmem:[#allocation7 + $0x188] sm:$0xff]
    %v105 = vld [vmem:[#allocation7 + $0x190] sm:$0xff]
    %v106 = vld [vmem:[#allocation7 + $0x198] sm:$0xff]
    %v107 = vld [vmem:[#allocation7 + $0x1a0] sm:$0xff]
    %v108 = vld [vmem:[#allocation7 + $0x1a8] sm:$0xff]
    %v109 = vld [vmem:[#allocation7 + $0x1b0] sm:$0xff]
    %v110 = vld [vmem:[#allocation7 + $0x1b8] sm:$0xff]
    %v111 = vld [vmem:[#allocation7 + $0x1c0] sm:$0xff]
    %v112 = vld [vmem:[#allocation7 + $0x1c8] sm:$0xff]
    %v113 = vld [vmem:[#allocation7 + $0x1d0] sm:$0xff]
    %v114 = vld [vmem:[#allocation7 + $0x1d8] sm:$0xff]
    %v115 = vld [vmem:[#allocation7 + $0x1e0] sm:$0xff]
    %v116 = vld [vmem:[#allocation7 + $0x1e8] sm:$0xff]
    %v117 = vld [vmem:[#allocation7 + $0x1f0] sm:$0xff]
    %v118 = vld [vmem:[#allocation7 + $0x1f8] sm:$0xff]
    %v119 = vld [vmem:[%s3] sm:$0xf]
    %v120 = vld [vmem:[#allocation2] sm:$0xf]
    %v121 = vld [vmem:[#allocation5] sm:$0xff]
    %v122 = vpack.c.bf16 %v121, %v121
    %v124 = vlaneseq
    %v125 = vshrl.u32 %v124, 7
    %v126 = vsub.s32 0, %v125
    %v127 = vrot.slane %v119, %v126
    %v128 = vlaneseq
    %v129 = vshrl.u32 %v128, 7
    %v130 = vsub.s32 1, %v129
    %v131 = vrot.slane %v119, %v130
    %v132 = vlaneseq
    %v133 = vshrl.u32 %v132, 7
    %v134 = vsub.s32 2, %v133
    %v135 = vrot.slane %v119, %v134
    %v136 = vlaneseq
    %v137 = vshrl.u32 %v136, 7
    %v138 = vsub.s32 3, %v137
    %v139 = vrot.slane %v119, %v138
    %v208 = vunpack.c.l.b16 %v55
    %v209 = vunpack.c.h.b16 %v55
    %v210 = vunpack.c.l.b16 %v56
    %v211 = vunpack.c.h.b16 %v56
    %v212 = vunpack.c.l.b16 %v57
    %v213 = vunpack.c.h.b16 %v57
    %v214 = vunpack.c.l.b16 %v58
    %v215 = vunpack.c.h.b16 %v58
    %v216 = vunpack.c.l.b16 %v59
    %v217 = vunpack.c.h.b16 %v59
    %v218 = vunpack.c.l.b16 %v60
    %v219 = vunpack.c.h.b16 %v60
    %v220 = vunpack.c.l.b16 %v61
    %v221 = vunpack.c.h.b16 %v61
    %v222 = vunpack.c.l.b16 %v62
    %v223 = vunpack.c.h.b16 %v62
    %v224 = vunpack.c.l.b16 %v63
    %v225 = vunpack.c.h.b16 %v63
    %v226 = vunpack.c.l.b16 %v64
    %v227 = vunpack.c.h.b16 %v64
    %v228 = vunpack.c.l.b16 %v65
    %v229 = vunpack.c.h.b16 %v65
    %v230 = vunpack.c.l.b16 %v66
    %v231 = vunpack.c.h.b16 %v66
    %v232 = vunpack.c.l.b16 %v67
    %v233 = vunpack.c.h.b16 %v67
    %v234 = vunpack.c.l.b16 %v68
    %v235 = vunpack.c.h.b16 %v68
    %v236 = vunpack.c.l.b16 %v69
    %v237 = vunpack.c.h.b16 %v69
    %v238 = vunpack.c.l.b16 %v70
    %v239 = vunpack.c.h.b16 %v70
    %v240 = vunpack.c.l.b16 %v71
    %v241 = vunpack.c.h.b16 %v71
    %v242 = vunpack.c.l.b16 %v72
    %v243 = vunpack.c.h.b16 %v72
    %v244 = vunpack.c.l.b16 %v73
    %v245 = vunpack.c.h.b16 %v73
    %v246 = vunpack.c.l.b16 %v74
    %v247 = vunpack.c.h.b16 %v74
    %v248 = vunpack.c.l.b16 %v75
    %v249 = vunpack.c.h.b16 %v75
    %v250 = vunpack.c.l.b16 %v76
    %v251 = vunpack.c.h.b16 %v76
    %v252 = vunpack.c.l.b16 %v77
    %v253 = vunpack.c.h.b16 %v77
    %v254 = vunpack.c.l.b16 %v78
    %v255 = vunpack.c.h.b16 %v78
    %v256 = vunpack.c.l.b16 %v79
    %v257 = vunpack.c.h.b16 %v79
    %v258 = vunpack.c.l.b16 %v80
    %v259 = vunpack.c.h.b16 %v80
    %v260 = vunpack.c.l.b16 %v81
    %v261 = vunpack.c.h.b16 %v81
    %v262 = vunpack.c.l.b16 %v82
    %v263 = vunpack.c.h.b16 %v82
    %v264 = vunpack.c.l.b16 %v83
    %v265 = vunpack.c.h.b16 %v83
    %v266 = vunpack.c.l.b16 %v84
    %v267 = vunpack.c.h.b16 %v84
    %v268 = vunpack.c.l.b16 %v85
    %v269 = vunpack.c.h.b16 %v85
    %v270 = vunpack.c.l.b16 %v86
    %v271 = vunpack.c.h.b16 %v86
    %v272 = vunpack.c.l.b16 %v87
    %v273 = vunpack.c.h.b16 %v87
    %v274 = vunpack.c.l.b16 %v88
    %v275 = vunpack.c.h.b16 %v88
    %v276 = vunpack.c.l.b16 %v89
    %v277 = vunpack.c.h.b16 %v89
    %v278 = vunpack.c.l.b16 %v90
    %v279 = vunpack.c.h.b16 %v90
    %v280 = vunpack.c.l.b16 %v91
    %v281 = vunpack.c.h.b16 %v91
    %v282 = vunpack.c.l.b16 %v92
    %v283 = vunpack.c.h.b16 %v92
    %v284 = vunpack.c.l.b16 %v93
    %v285 = vunpack.c.h.b16 %v93
    %v286 = vunpack.c.l.b16 %v94
    %v287 = vunpack.c.h.b16 %v94
    %v288 = vunpack.c.l.b16 %v95
    %v289 = vunpack.c.h.b16 %v95
    %v290 = vunpack.c.l.b16 %v96
    %v291 = vunpack.c.h.b16 %v96
    %v292 = vunpack.c.l.b16 %v97
    %v293 = vunpack.c.h.b16 %v97
    %v294 = vunpack.c.l.b16 %v98
    %v295 = vunpack.c.h.b16 %v98
    %v296 = vunpack.c.l.b16 %v99
    %v297 = vunpack.c.h.b16 %v99
    %v298 = vunpack.c.l.b16 %v100
    %v299 = vunpack.c.h.b16 %v100
    %v300 = vunpack.c.l.b16 %v101
    %v301 = vunpack.c.h.b16 %v101
    %v302 = vunpack.c.l.b16 %v102
    %v303 = vunpack.c.h.b16 %v102
    %v304 = vunpack.c.l.b16 %v103
    %v305 = vunpack.c.h.b16 %v103
    %v306 = vunpack.c.l.b16 %v104
    %v307 = vunpack.c.h.b16 %v104
    %v308 = vunpack.c.l.b16 %v105
    %v309 = vunpack.c.h.b16 %v105
    %v310 = vunpack.c.l.b16 %v106
    %v311 = vunpack.c.h.b16 %v106
    %v312 = vunpack.c.l.b16 %v107
    %v313 = vunpack.c.h.b16 %v107
    %v314 = vunpack.c.l.b16 %v108
    %v315 = vunpack.c.h.b16 %v108
    %v316 = vunpack.c.l.b16 %v109
    %v317 = vunpack.c.h.b16 %v109
    %v318 = vunpack.c.l.b16 %v110
    %v319 = vunpack.c.h.b16 %v110
    %v320 = vunpack.c.l.b16 %v111
    %v321 = vunpack.c.h.b16 %v111
    %v322 = vunpack.c.l.b16 %v112
    %v323 = vunpack.c.h.b16 %v112
    %v324 = vunpack.c.l.b16 %v113
    %v325 = vunpack.c.h.b16 %v113
    %v326 = vunpack.c.l.b16 %v114
    %v327 = vunpack.c.h.b16 %v114
    %v328 = vunpack.c.l.b16 %v115
    %v329 = vunpack.c.h.b16 %v115
    %v330 = vunpack.c.l.b16 %v116
    %v331 = vunpack.c.h.b16 %v116
    %v332 = vunpack.c.l.b16 %v117
    %v333 = vunpack.c.h.b16 %v117
    %v334 = vunpack.c.l.b16 %v118
    %v335 = vunpack.c.h.b16 %v118
    %v336 = vpack.c.b16 %v212, %v208
    %v337 = vpack.c.b16 %v213, %v209
    %v338 = vpack.c.b16 %v214, %v210
    %v339 = vpack.c.b16 %v215, %v211
    %v340 = vpack.c.b16 %v220, %v216
    %v341 = vpack.c.b16 %v221, %v217
    %v342 = vpack.c.b16 %v222, %v218
    %v343 = vpack.c.b16 %v223, %v219
    %v344 = vpack.c.b16 %v228, %v224
    %v345 = vpack.c.b16 %v229, %v225
    %v346 = vpack.c.b16 %v230, %v226
    %v347 = vpack.c.b16 %v231, %v227
    %v348 = vpack.c.b16 %v236, %v232
    %v349 = vpack.c.b16 %v237, %v233
    %v350 = vpack.c.b16 %v238, %v234
    %v351 = vpack.c.b16 %v239, %v235
    %v352 = vpack.c.b16 %v244, %v240
    %v353 = vpack.c.b16 %v245, %v241
    %v354 = vpack.c.b16 %v246, %v242
    %v355 = vpack.c.b16 %v247, %v243
    %v356 = vpack.c.b16 %v252, %v248
    %v357 = vpack.c.b16 %v253, %v249
    %v358 = vpack.c.b16 %v254, %v250
    %v359 = vpack.c.b16 %v255, %v251
    %v360 = vpack.c.b16 %v260, %v256
    %v361 = vpack.c.b16 %v261, %v257
    %v362 = vpack.c.b16 %v262, %v258
    %v363 = vpack.c.b16 %v263, %v259
    %v364 = vpack.c.b16 %v268, %v264
    %v365 = vpack.c.b16 %v269, %v265
    %v366 = vpack.c.b16 %v270, %v266
    %v367 = vpack.c.b16 %v271, %v267
    %v368 = vpack.c.b16 %v276, %v272
    %v369 = vpack.c.b16 %v277, %v273
    %v370 = vpack.c.b16 %v278, %v274
    %v371 = vpack.c.b16 %v279, %v275
    %v372 = vpack.c.b16 %v284, %v280
    %v373 = vpack.c.b16 %v285, %v281
    %v374 = vpack.c.b16 %v286, %v282
    %v375 = vpack.c.b16 %v287, %v283
    %v376 = vpack.c.b16 %v292, %v288
    %v377 = vpack.c.b16 %v293, %v289
    %v378 = vpack.c.b16 %v294, %v290
    %v379 = vpack.c.b16 %v295, %v291
    %v380 = vpack.c.b16 %v300, %v296
    %v381 = vpack.c.b16 %v301, %v297
    %v382 = vpack.c.b16 %v302, %v298
    %v383 = vpack.c.b16 %v303, %v299
    %v384 = vpack.c.b16 %v308, %v304
    %v385 = vpack.c.b16 %v309, %v305
    %v386 = vpack.c.b16 %v310, %v306
    %v387 = vpack.c.b16 %v311, %v307
    %v388 = vpack.c.b16 %v316, %v312
    %v389 = vpack.c.b16 %v317, %v313
    %v390 = vpack.c.b16 %v318, %v314
    %v391 = vpack.c.b16 %v319, %v315
    %v392 = vpack.c.b16 %v324, %v320
    %v393 = vpack.c.b16 %v325, %v321
    %v394 = vpack.c.b16 %v326, %v322
    %v395 = vpack.c.b16 %v327, %v323
    %v396 = vpack.c.b16 %v332, %v328
    %v397 = vpack.c.b16 %v333, %v329
    %v398 = vpack.c.b16 %v334, %v330
    %v399 = vpack.c.b16 %v335, %v331
    %464 = vmatprep.subr.bf16.mxu0 %v365
    %465 = vmatpush1.bf16.msra.mxu0 %v364
    %466 = vmatprep.subr.bf16.mxu0 %v361
    %467 = vmatpush1.bf16.msra.mxu0 %v360
    %468 = vmatprep.subr.bf16.mxu0 %v357
    %469 = vmatpush1.bf16.msra.mxu0 %v356
    %470 = vmatprep.subr.bf16.mxu0 %v353
    %471 = vmatpush1.bf16.msra.mxu0 %v352
    %472 = vmatprep.subr.bf16.mxu0 %v349
    %473 = vmatpush1.bf16.msra.mxu0 %v348
    %474 = vmatprep.subr.bf16.mxu0 %v345
    %475 = vmatpush1.bf16.msra.mxu0 %v344
    %476 = vmatprep.subr.bf16.mxu0 %v341
    %477 = vmatpush1.bf16.msra.mxu0 %v340
    %478 = vmatprep.subr.bf16.mxu0 %v337
    %479 = vmatpush1.bf16.msra.mxu0 %v336
    %480 = vmatprep.subr.bf16.mxu0 %v397
    %481 = vmatpush2.bf16.msra.mxu0 %v396
    %482 = vmatprep.subr.bf16.mxu0 %v393
    %483 = vmatpush2.bf16.msra.mxu0 %v392
    %484 = vmatprep.subr.bf16.mxu0 %v389
    %485 = vmatpush2.bf16.msra.mxu0 %v388
    %486 = vmatprep.subr.bf16.mxu0 %v385
    %487 = vmatpush2.bf16.msra.mxu0 %v384
    %488 = vmatprep.subr.bf16.mxu0 %v381
    %489 = vmatpush2.bf16.msra.mxu0 %v380
    %490 = vmatprep.subr.bf16.mxu0 %v377
    %491 = vmatpush2.bf16.msra.mxu0 %v376
    %492 = vmatprep.subr.bf16.mxu0 %v373
    %493 = vmatpush2.bf16.msra.mxu0 %v372
    %494 = vmatprep.subr.bf16.mxu0 %v369
    %495 = vmatpush2.bf16.msra.mxu0 %v368
    %496 = vmatprep.mubr.bf16.mxu0 %v122
    %497 = vmatmul.mubr.bf16.gmra.mxu0 %v120
    %v498 = vpop.f32.mrf.mxu0
    %v499 = vadd.f32 %v127, %v498
    %v500 = vpop.f32.mrf.mxu0
    %v501 = vadd.f32 %v131, %v500
    %v502 = vpop.f32.mrf.mxu0
    %v503 = vpop.f32.mrf.mxu0
    %504 = vdwg.mxu0
    %505 = vmatprep.subr.bf16.mxu0 %v367
    %506 = vmatpush1.bf16.msra.mxu0 %v366
    %507 = vmatprep.subr.bf16.mxu0 %v363
    %508 = vmatpush1.bf16.msra.mxu0 %v362
    %509 = vmatprep.subr.bf16.mxu0 %v359
    %510 = vmatpush1.bf16.msra.mxu0 %v358
    %511 = vmatprep.subr.bf16.mxu0 %v355
    %512 = vmatpush1.bf16.msra.mxu0 %v354
    %513 = vmatprep.subr.bf16.mxu0 %v351
    %514 = vmatpush1.bf16.msra.mxu0 %v350
    %515 = vmatprep.subr.bf16.mxu0 %v347
    %516 = vmatpush1.bf16.msra.mxu0 %v346
    %517 = vmatprep.subr.bf16.mxu0 %v343
    %518 = vmatpush1.bf16.msra.mxu0 %v342
    %519 = vmatprep.subr.bf16.mxu0 %v339
    %520 = vmatpush1.bf16.msra.mxu0 %v338
    %521 = vmatprep.subr.bf16.mxu0 %v399
    %522 = vmatpush2.bf16.msra.mxu0 %v398
    %523 = vmatprep.subr.bf16.mxu0 %v395
    %524 = vmatpush2.bf16.msra.mxu0 %v394
    %525 = vmatprep.subr.bf16.mxu0 %v391
    %526 = vmatpush2.bf16.msra.mxu0 %v390
    %527 = vmatprep.subr.bf16.mxu0 %v387
    %528 = vmatpush2.bf16.msra.mxu0 %v386
    %529 = vmatprep.subr.bf16.mxu0 %v383
    %530 = vmatpush2.bf16.msra.mxu0 %v382
    %531 = vmatprep.subr.bf16.mxu0 %v379
    %532 = vmatpush2.bf16.msra.mxu0 %v378
    %533 = vmatprep.subr.bf16.mxu0 %v375
    %534 = vmatpush2.bf16.msra.mxu0 %v374
    %535 = vmatprep.subr.bf16.mxu0 %v371
    %536 = vmatpush2.bf16.msra.mxu0 %v370
    %537 = vmatprep.mubr.bf16.mxu0 %v122
    %538 = vmatmul.mubr.bf16.gmra.mxu0 %v120
    %v539 = vpop.f32.mrf.mxu0
    %v540 = vadd.f32 %v135, %v539
    %v541 = vpop.f32.mrf.mxu0
    %v542 = vadd.f32 %v139, %v541
    %v543 = vpop.f32.mrf.mxu0
    %v544 = vpop.f32.mrf.mxu0
    %545 = vdwg.mxu0
    %v546 = vxor.u32 %v499, 2147483648
    %v547 = vmul.f32 %v546, 1.442695
    %v548 = vpow.pop %v547
    %v549 = vadd.f32 %v548, 1.0
    %v550 = vrcp.pop %v549
    %v551 = vmul.f32 1.0, %v550
    %v552 = vxor.u32 %v501, 2147483648
    %v553 = vmul.f32 %v552, 1.442695
    %v554 = vpow.pop %v553
    %v555 = vadd.f32 %v554, 1.0
    %v556 = vrcp.pop %v555
    %v557 = vmul.f32 1.0, %v556
    %v558 = vmul.f32 %v551, %v542
    %v559 = vadd.f32 %v540, %v558
    %v560 = vtanh.pop %v559
    %v561 = vsub.f32 %v121, %v560
    %v562 = vmul.f32 %v557, %v561
    %v563 = vadd.f32 %v560, %v562
    %564 = vst [vmem:[#allocation8] sm:$0xff] %v563
    // Predicated region
    $region30: #{tpu_custom_call.1} parent=1 // pred_check
      _
    $region31: #{tpu_custom_call.1} parent=1 // pred_check_branch
      %566 = sbr.rel (0) target = $region33
    $region32: #{tpu_custom_call.1} parent=1 // pred_region
      %s568 = ssub.s32 128, 128
      %569 = vsyncadd [#allocation4], %s568
      %s571 = sshll.u32 [#allocation8], 4
      %s572 = int_to_ptr.vmem [resolvable:$true] %s571
      %574 = dma.vmem_to_hbm [thread:$0]  %s572, 128, %s4, [#allocation4]
    $region33: #{tpu_custom_call.1} parent=1 // pred_fallthru
      _
    // Predicated region
    $region34: #{tpu_custom_call.1} parent=1 // pred_check
      _
    $region35: #{tpu_custom_call.1} parent=1 // pred_check_branch
      %576 = sbr.rel (0) target = $region37
    $region36: #{tpu_custom_call.1} parent=1 // pred_region
      %577 = dma.done [#allocation4], 128
    $region37: #{tpu_custom_call.1} parent=1 // pred_fallthru
      _
    %578 = vsyncpa [#allocation3], 1
    %579 = vsyncpa [#allocation6], 1
    %580 = vsyncpa [#allocation4], 1

</llo_original>
